<compile_context>
chip_gen: v6e
topology: v6e:2x2x1
jax: 0.10.0
libtpu: 0.0.40
codegen_flags: <defaults>
</compile_context>

<pallas_src>
from functools import lru_cache, partial

import numpy as np
import jax
import jax.numpy as jnp
from jax.experimental import pallas as pl
from jax.experimental.pallas import tpu as pltpu


@lru_cache(maxsize=None)
def _bilinear_weight_matrix(in_size: int, out_size: int) -> np.ndarray:
    """Dense (out_size, in_size) 1-D bilinear interpolation matrix, align_corners=False.

    Matches PyTorch F.interpolate(mode='bilinear', align_corners=False, antialias=False):
    half-pixel centers, negative source coords clamped to 0, last index clamped.
    """
    i = np.arange(out_size, dtype=np.float64)
    scale = in_size / out_size
    src = np.maximum((i + 0.5) * scale - 0.5, 0.0)
    i0 = np.minimum(np.floor(src).astype(np.int64), in_size - 1)
    i1 = np.minimum(i0 + 1, in_size - 1)
    w1 = src - i0
    w0 = 1.0 - w1
    w = np.zeros((out_size, in_size), dtype=np.float32)
    rows = np.arange(out_size)
    np.add.at(w, (rows, i0), w0)
    np.add.at(w, (rows, i1), w1)
    return w


def _resize_kernel(wh_ref, wwt_ref, x_ref, o_ref, *, width_first: bool):
    # wh_ref  : (Hout, Hin)      height interpolation weights (compute dtype)
    # wwt_ref : (Win,  Wout)     width interpolation weights, transposed (compute dtype)
    # x_ref   : (B, Hin, Win)    input slab
    # o_ref   : (B, Hout, Wout)  output slab (lane-dense, written per image)
    B, Hin, Win = x_ref.shape
    Hout = wh_ref.shape[0]
    Wout = wwt_ref.shape[1]

    wh = wh_ref[...]
    wwt = wwt_ref[...]
    cdt = wh.dtype

    if width_first:
        # Stage 1 (width): ONE lane-dense GEMM over the whole block, M = B*Hin, N = Wout.
        x2d = x_ref[...].reshape(B * Hin, Win).astype(cdt)
        u = jnp.dot(x2d, wwt, preferred_element_type=jnp.float32)      # (B*Hin, Wout)
        u = u.astype(cdt).reshape(B, Hin, Wout)
        # Stage 2 (height): per image, result goes straight into o_ref[b] (no concat).
        for b in range(B):
            ob = jnp.dot(wh, u[b], preferred_element_type=jnp.float32)  # (Hout, Wout)
            o_ref[b] = ob.astype(o_ref.dtype)
    else:
        # General / asymmetric case: per-image two-GEMM chain, no batched intermediate.
        for b in range(B):
            t = jnp.dot(wh, x_ref[b].astype(cdt), preferred_element_type=jnp.float32)
            ob = jnp.dot(t.astype(cdt), wwt, preferred_element_type=jnp.float32)
            o_ref[b] = ob.astype(o_ref.dtype)


def _tpu_vmem_capacity_bytes() -> int:
    try:
        info = pltpu.get_tpu_info()
        return int(getattr(info, "vmem_capacity_bytes", 64 << 20))
    except Exception:
        return 64 << 20  # conservative (v7x-sized) fallback


def input_resizer_vit(x: jnp.ndarray,
                      target_size=(224, 224),
                      compute_dtype=jnp.bfloat16,
                      out_dtype=None) -> jnp.ndarray:
    """Equivalent of InputResizerVIT.forward's F.interpolate stage (NCHW in/out).

    The wrapped ViT (conv_proj / class_token / pos_embedding / encoder) is external,
    so the post-resize stages are identity here (see TODO at top of file).
    """
    N, C, Hin, Win = x.shape
    Hout, Wout = int(target_size[0]), int(target_size[1])
    out_dtype = x.dtype if out_dtype is None else jnp.dtype(out_dtype)
    NC = N * C

    wh_np = _bilinear_weight_matrix(Hin, Hout)            # (Hout, Hin)
    ww_np = _bilinear_weight_matrix(Win, Wout)            # (Wout, Win)
    wh = jnp.asarray(wh_np, dtype=compute_dtype)          # (Hout, Hin)
    wwt = jnp.asarray(ww_np.T, dtype=compute_dtype)       # (Win, Wout)

    # Stage order: smaller intermediate wins; tie -> width-first (lane-dense for Wout>=128).
    width_first = (Hin * Wout) <= (Hout * Win)

    # ---- per-generation block sizing (memory-bound kernel: make the slabs big) ----
    vmem_cap = _tpu_vmem_capacity_bytes()
    big_vmem = vmem_cap >= (96 << 20)          # v5e / v6e: 128 MiB per TensorCore
    if big_vmem:
        block_budget = 48 << 20
        b_cap = 64
        min_steps = 1                          # single TC: never fragment the grid
        vmem_clamp = 96 << 20
    else:                                      # v7x: 64 MiB per TC, 2 TCs per chip
        block_budget = 20 << 20
        b_cap = 32
        min_steps = 4                          # >= 2 grid steps per TensorCore
        vmem_clamp = 48 << 20

    f32 = 4
    cds = jnp.dtype(compute_dtype).itemsize
    obt = jnp.dtype(out_dtype).itemsize
    inter = Hin * Wout if width_first else Hout * Win
    # Double-buffering accounted for ONCE here (w_bytes and the in/out terms of per_img).
    w_bytes = 2 * (Hout * Hin + Win * Wout) * cds
    per_img = (2 * Hin * Win) * f32 + Hin * Win * cds \
        + (2 * Hout * Wout) * obt \
        + inter * (f32 + cds) \
        + Hout * Wout * f32
    headroom = 6 << 20

    b_budget = max(1, int((block_budget - w_bytes) // per_img))
    b_max = max(1, min(b_budget, b_cap))
    if min_steps > 1 and NC >= min_steps:
        b_max = min(b_max, NC // min_steps)
    b_max = max(1, min(b_max, NC))

    # Largest divisor of NC that fits -> no padding, no output slice-copy.
    B = 1
    for d in range(1, b_max + 1):
        if NC % d == 0:
            B = d
    num_blocks = NC // B

    vmem_limit = int(min(vmem_clamp, max(32 << 20, w_bytes + per_img * B + headroom)))

    x_flat = x.reshape(NC, Hin, Win)

    out_flat = pl.pallas_call(
        partial(_resize_kernel, width_first=width_first),
        out_shape=jax.ShapeDtypeStruct((NC, Hout, Wout), out_dtype),
        grid=(num_blocks,),
        in_specs=[
            pl.BlockSpec((Hout, Hin), lambda i: (0, 0)),
            pl.BlockSpec((Win, Wout), lambda i: (0, 0)),
            pl.BlockSpec((B, Hin, Win), lambda i: (i, 0, 0)),
        ],
        out_specs=pl.BlockSpec((B, Hout, Wout), lambda i: (i, 0, 0)),
        compiler_params=pltpu.CompilerParams(
            dimension_semantics=("parallel",),
            vmem_limit_bytes=vmem_limit,
        ),
    )(wh, wwt, x_flat)

    y = out_flat.reshape(N, C, Hout, Wout)   # contiguous reshape: no copy
    # original_model(y) -> identity (see TODO at top of file)
    return y


if __name__ == "__main__":
    key = jax.random.PRNGKey(0)
    x = jax.random.normal(key, (2, 4, 16, 16), dtype=jnp.float32)  # NCHW

    # Pure-JAX reference with the same (f32) interpolation weights.
    wh32 = jnp.asarray(_bilinear_weight_matrix(16, 224))            # (224, 16)
    wwt32 = jnp.asarray(_bilinear_weight_matrix(16, 224).T)         # (16, 224)
    ref = jnp.einsum("oh,nchw->ncow", wh32, x)
    ref = jnp.einsum("ncow,wv->ncov", ref, wwt32)

    # Default bf16-compute path (f32 accumulation, f32 output).
    y = input_resizer_vit(x)                                        # target (224, 224)
    y = jax.block_until_ready(y)
    assert y.shape == (2, 4, 224, 224)
    assert bool(jnp.all(jnp.isfinite(y)))
    assert float(jnp.max(jnp.abs(y - ref))) < 1e-1

    # Exact-f32 compute path (parity with PyTorch F.interpolate weights).
    y32 = input_resizer_vit(x, compute_dtype=jnp.float32)
    y32 = jax.block_until_ready(y32)
    assert float(jnp.max(jnp.abs(y32 - ref))) < 1e-4

    # Optional bf16 output (halves the roofline-dominant HBM writes).
    yb = input_resizer_vit(x, out_dtype=jnp.bfloat16)
    yb = jax.block_until_ready(yb)
    assert yb.dtype == jnp.bfloat16
    assert float(jnp.max(jnp.abs(yb.astype(jnp.float32) - ref))) < 2e-1

    print("KERNEL_OK")
</pallas_src>

<mosaic_0001>
module attributes {stable_mosaic.version = 11 : i64} {
  func.func @_resize_kernel(%arg0: i32, %arg1: memref<224x16xbf16, #tpu.memory_space<vmem>>, %arg2: memref<16x224xbf16, #tpu.memory_space<vmem>>, %arg3: memref<2x16x16xf32, #tpu.memory_space<vmem>>, %arg4: memref<2x224x224xf32, #tpu.memory_space<vmem>>) attributes {dimension_semantics = [#tpu.dimension_semantics<parallel>], iteration_bounds = array<i64: 4>, scalar_prefetch = 0 : i64, scratch_operands = 0 : i64, tpu.core_type = #tpu.core_type<tc>, window_params = [{pipeline_mode = #tpu.pipeline_mode<synchronous>, transform_indices = @transform_0, window_bounds = array<i64: 224, 16>}, {pipeline_mode = #tpu.pipeline_mode<synchronous>, transform_indices = @transform_1, window_bounds = array<i64: 16, 224>}, {transform_indices = @transform_2, window_bounds = array<i64: 2, 16, 16>}, {transform_indices = @transform_3, window_bounds = array<i64: 2, 224, 224>}]} {
    %c0 = arith.constant 0 : index
    %c0_0 = arith.constant 0 : index
    %0 = vector.load %arg1[%c0, %c0_0] : memref<224x16xbf16, #tpu.memory_space<vmem>>, vector<224x16xbf16>
    %c0_1 = arith.constant 0 : index
    %c0_2 = arith.constant 0 : index
    %1 = vector.load %arg2[%c0_1, %c0_2] : memref<16x224xbf16, #tpu.memory_space<vmem>>, vector<16x224xbf16>
    %c0_3 = arith.constant 0 : index
    %c0_4 = arith.constant 0 : index
    %c0_5 = arith.constant 0 : index
    %2 = vector.load %arg3[%c0_3, %c0_4, %c0_5] : memref<2x16x16xf32, #tpu.memory_space<vmem>>, vector<2x16x16xf32>
    %3 = vector.shape_cast %2 : vector<2x16x16xf32> to vector<32x16xf32>
    %4 = arith.truncf %3 : vector<32x16xf32> to vector<32x16xbf16>
    %cst = arith.constant dense<0.000000e+00> : vector<32x224xf32>
    %5 = tpu.matmul %4, %1, %cst {dimension_numbers = #tpu.dot_dimension_numbers<[1], [0], [0], [1], [0, 0, 1, 1], [], []>} : vector<32x16xbf16>, vector<16x224xbf16>, vector<32x224xf32> -> vector<32x224xf32>
    %6 = arith.truncf %5 : vector<32x224xf32> to vector<32x224xbf16>
    %7 = vector.shape_cast %6 : vector<32x224xbf16> to vector<2x16x224xbf16>
    %8 = vector.extract_strided_slice %7 {offsets = [0, 0, 0], sizes = [1, 16, 224], strides = [1, 1, 1]} : vector<2x16x224xbf16> to vector<1x16x224xbf16>
    %9 = vector.shape_cast %8 : vector<1x16x224xbf16> to vector<16x224xbf16>
    %cst_6 = arith.constant dense<0.000000e+00> : vector<224x224xf32>
    %10 = tpu.matmul %0, %9, %cst_6 {dimension_numbers = #tpu.dot_dimension_numbers<[1], [0], [0], [1], [0, 0, 1, 1], [], []>} : vector<224x16xbf16>, vector<16x224xbf16>, vector<224x224xf32> -> vector<224x224xf32>
    %c0_7 = arith.constant 0 : index
    %c0_8 = arith.constant 0 : index
    %c0_9 = arith.constant 0 : index
    %11 = vector.load %arg4[%c0_7, %c0_8, %c0_9] : memref<2x224x224xf32, #tpu.memory_space<vmem>>, vector<1x224x224xf32>
    %12 = vector.shape_cast %11 : vector<1x224x224xf32> to vector<224x224xf32>
    %13 = vector.shape_cast %10 : vector<224x224xf32> to vector<1x224x224xf32>
    tpu.vector_store %arg4[%c0_7, %c0_8, %c0_9], %13 {strides = array<i32>} : memref<2x224x224xf32, #tpu.memory_space<vmem>>, vector<1x224x224xf32>,
    %14 = vector.extract_strided_slice %7 {offsets = [1, 0, 0], sizes = [1, 16, 224], strides = [1, 1, 1]} : vector<2x16x224xbf16> to vector<1x16x224xbf16>
    %15 = vector.shape_cast %14 : vector<1x16x224xbf16> to vector<16x224xbf16>
    %cst_10 = arith.constant dense<0.000000e+00> : vector<224x224xf32>
    %16 = tpu.matmul %0, %15, %cst_10 {dimension_numbers = #tpu.dot_dimension_numbers<[1], [0], [0], [1], [0, 0, 1, 1], [], []>} : vector<224x16xbf16>, vector<16x224xbf16>, vector<224x224xf32> -> vector<224x224xf32>
    %c1 = arith.constant 1 : index
    %c0_11 = arith.constant 0 : index
    %c0_12 = arith.constant 0 : index
    %17 = vector.load %arg4[%c1, %c0_11, %c0_12] : memref<2x224x224xf32, #tpu.memory_space<vmem>>, vector<1x224x224xf32>
    %18 = vector.shape_cast %17 : vector<1x224x224xf32> to vector<224x224xf32>
    %19 = vector.shape_cast %16 : vector<224x224xf32> to vector<1x224x224xf32>
    tpu.vector_store %arg4[%c1, %c0_11, %c0_12], %19 {strides = array<i32>} : memref<2x224x224xf32, #tpu.memory_space<vmem>>, vector<1x224x224xf32>,
    return
  }
  func.func @transform_0(%arg0: i32) -> (i32, i32) {
    %c0_i32 = arith.constant 0 : i32
    %c0_i32_0 = arith.constant 0 : i32
    %c0_i32_1 = arith.constant 0 : i32
    return %c0_i32, %c0_i32_0 : i32, i32
  }
  func.func @transform_1(%arg0: i32) -> (i32, i32) {
    %c0_i32 = arith.constant 0 : i32
    %c0_i32_0 = arith.constant 0 : i32
    %c0_i32_1 = arith.constant 0 : i32
    return %c0_i32, %c0_i32_0 : i32, i32
  }
  func.func @transform_2(%arg0: i32) -> (i32, i32, i32) {
    %c0_i32 = arith.constant 0 : i32
    %c0_i32_0 = arith.constant 0 : i32
    %c0_i32_1 = arith.constant 0 : i32
    return %arg0, %c0_i32, %c0_i32_0 : i32, i32, i32
  }
  func.func @transform_3(%arg0: i32) -> (i32, i32, i32) {
    %c0_i32 = arith.constant 0 : i32
    %c0_i32_0 = arith.constant 0 : i32
    %c0_i32_1 = arith.constant 0 : i32
    return %arg0, %c0_i32, %c0_i32_0 : i32, i32, i32
  }
}

</mosaic_0001>

<llo_original>
// kernel: tpu_custom_call.1
$region0: #{tpu_custom_call.1}
  #allocation0 [shape = 'u32[]', space=smem, size = 0x4, offset = 0x4, fixed_abs, tag = 'smem constant byte address 0x4 - core index']
  #allocation1 [shape = 'u32[144,128]{1,0:T(1,128)}', space=vmem, size = 0x12000, scoped, tag = 'internal scratch']
  %s0 = inlined_call_operand.vmem [shape: bf16[224,16], index: 0, kind: input, shape index: {}]
  %s1 = inlined_call_operand.hbm [shape: bf16[16,224], index: 1, kind: input, shape index: {}]
  %s2 = inlined_call_operand.hbm [shape: f32[8,16,16], index: 2, kind: input, shape index: {}]
  %s3 = inlined_call_operand.hbm [shape: f32[8,224,224], index: 3, kind: output, shape index: {}]
  %s4 = sld [smem:[#allocation0]]
  $region53: #{tpu_custom_call.1} parent=0
    _
  %s6 = ssub.s32 1, %s4
  %s7 = scalar_select 0, %s6, %s4
  $region1: #{tpu_custom_call.1} parent=0
    #allocation2 [shape = 'u8[8192]{0}', space=vmem, size = 0x2000, scoped, tag = 'input window, operand 1, single buffered']
    #allocation3 [shape = 's32[2]{0}', space=sflag, size = 0x8, scoped, tag = 'scoped memory for tpu_custom_call.1']
    #allocation4 [shape = 's32[2]{0}', space=sflag, size = 0x8, scoped, tag = 'scoped memory for tpu_custom_call.1']
    #allocation5 [shape = 'u8[32768]{0}', space=vmem, size = 0x8000, scoped, tag = 'input window, operand 2']
    #allocation6 [shape = 's32[2]{0}', space=sflag, size = 0x8, scoped, tag = 'scoped memory for tpu_custom_call.1']
    #allocation7 [shape = 'u8[917504]{0}', space=vmem, size = 0xe0000, scoped, tag = 'output window, operand 0']
    %8 = vsyncpa [#allocation3], 0
    %9 = vsyncpa [#allocation6], 0
    %s10 = scalar_lea.sflag [#allocation6], 1
    %11 = vsyncpa %s10, 0
    %12 = vsyncpa [#allocation4], 0
    %s13 = scalar_lea.sflag [#allocation4], 1
    %14 = vsyncpa %s13, 0
    loop: start=0, step=1, limit=6
    $region2: #{tpu_custom_call.1} parent=1 // loop_pre_header
      _
    $region3: #{tpu_custom_call.1} parent=1 // loop_header
      %s16 = sphi 0, %s20
      %p17 = scmp.ge.s32.totalorder %s16, 6
      %s24 = sphi 0, %s24
      %s26 = sphi 0, %s24
      %s27 = sphi 0, %s26
      %s41 = sphi 0, %s27
      %s45 = sphi 0, %s45
      %s47 = sphi 0, %s45
      %s48 = sphi 0, %s47
      %s62 = sphi 0, %s48
      %s68 = sphi 0, %s70
      %s71 = sphi 0, %s68
      %s72 = sphi 0, %s71
      %s88 = sphi 0, %s72
      %s94 = sphi 0, %s96
      %s97 = sphi 0, %s94
      %s98 = sphi 0, %s97
      %s114 = sphi 0, %s98
    $region4: #{tpu_custom_call.1} parent=1 // loop_header_branch
      %19 = sbr.rel (%p17) target = $region8
    $region5: #{tpu_custom_call.1} parent=1 // loop_body
      %s21 = ssub.s32 %s16, 1
      %s22 = ssub.s32 %s16, 2
      %s23 = sadd.s32 %s16, 1
      %s25 = sadd.s32 %s24, 1
      %p28 = scmp.eq.s32.totalorder %s16, 3
      %p29 = scmp.ne.s32.totalorder %s24, %s26
      %p30 = scmp.eq.s32.totalorder %s16, 0
      %p31 = por %p29, %p30
      %p32 = scmp.ne.s32.totalorder %s24, %s26
      %p33 = scmp.eq.s32.totalorder %s21, 3
      %p34 = por %p32, %p33
      %p35 = scmp.ne.s32.totalorder %s26, %s27
      %p36 = scmp.eq.s32.totalorder %s21, 0
      %p37 = por %p35, %p36
      %p38 = scmp.ne.s32.totalorder %s26, %s27
      %p39 = scmp.eq.s32.totalorder %s22, 3
      %p40 = por %p38, %p39
      %p42 = scmp.ne.s32.totalorder %s27, %s41
      %p43 = scmp.eq.s32.totalorder %s22, 0
      %p44 = por %p42, %p43
      %s46 = sadd.s32 %s45, 1
      %p49 = scmp.eq.s32.totalorder %s16, 3
      %p50 = scmp.ne.s32.totalorder %s45, %s47
      %p51 = scmp.eq.s32.totalorder %s16, 0
      %p52 = por %p50, %p51
      %p53 = scmp.ne.s32.totalorder %s45, %s47
      %p54 = scmp.eq.s32.totalorder %s21, 3
      %p55 = por %p53, %p54
      %p56 = scmp.ne.s32.totalorder %s47, %s48
      %p57 = scmp.eq.s32.totalorder %s21, 0
      %p58 = por %p56, %p57
      %p59 = scmp.ne.s32.totalorder %s47, %s48
      %p60 = scmp.eq.s32.totalorder %s22, 3
      %p61 = por %p59, %p60
      %p63 = scmp.ne.s32.totalorder %s48, %s62
      %p64 = scmp.eq.s32.totalorder %s22, 0
      %p65 = por %p63, %p64
      %s66 = ssub.s32 %s16, %s23
      %p67 = scmp.eq.s32.totalorder %s66, 0
      %s69 = sadd.s32 %s68, 1
      %s70 = scalar_select %p67, %s68, %s69
      %p73 = pneg %p67
      %p74 = scmp.eq.s32.totalorder %s16, 3
      %p75 = por %p73, %p74
      %p76 = scmp.ne.s32.totalorder %s68, %s71
      %p77 = scmp.eq.s32.totalorder %s16, 0
      %p78 = por %p76, %p77
      %p79 = scmp.ne.s32.totalorder %s68, %s71
      %p80 = scmp.eq.s32.totalorder %s21, 3
      %p81 = por %p79, %p80
      %p82 = scmp.ne.s32.totalorder %s71, %s72
      %p83 = scmp.eq.s32.totalorder %s21, 0
      %p84 = por %p82, %p83
      %p85 = scmp.ne.s32.totalorder %s71, %s72
      %p86 = scmp.eq.s32.totalorder %s22, 3
      %p87 = por %p85, %p86
      %p89 = scmp.ne.s32.totalorder %s72, %s88
      %p90 = scmp.eq.s32.totalorder %s22, 0
      %p91 = por %p89, %p90
      %s92 = ssub.s32 %s16, %s23
      %p93 = scmp.eq.s32.totalorder %s92, 0
      %s95 = sadd.s32 %s94, 1
      %s96 = scalar_select %p93, %s94, %s95
      %p99 = pneg %p93
      %p100 = scmp.eq.s32.totalorder %s16, 3
      %p101 = por %p99, %p100
      %p102 = scmp.ne.s32.totalorder %s94, %s97
      %p103 = scmp.eq.s32.totalorder %s16, 0
      %p104 = por %p102, %p103
      %p105 = scmp.ne.s32.totalorder %s94, %s97
      %p106 = scmp.eq.s32.totalorder %s21, 3
      %p107 = por %p105, %p106
      %p108 = scmp.ne.s32.totalorder %s97, %s98
      %p109 = scmp.eq.s32.totalorder %s21, 0
      %p110 = por %p108, %p109
      %p111 = scmp.ne.s32.totalorder %s97, %s98
      %p112 = scmp.eq.s32.totalorder %s22, 3
      %p113 = por %p111, %p112
      %p115 = scmp.ne.s32.totalorder %s98, %s114
      %p116 = scmp.eq.s32.totalorder %s22, 0
      %p117 = por %p115, %p116
      %p118 = scmp.le.s32.totalorder 1, %s16
      %p119 = scmp.lt.s32.totalorder %s16, 5
      %p120 = pnand %p118, %p119
      %p121 = pneg %p120
      // Predicated region
      $region9: #{tpu_custom_call.1} parent=5 // pred_check
        _
      $region10: #{tpu_custom_call.1} parent=5 // pred_check_branch
        %123 = sbr.rel (%p120) target = $region12
      $region11: #{tpu_custom_call.1} parent=5 // pred_region
        %s124 = ssub.s32 %s16, 1
        // Predicated region
        $region13: #{tpu_custom_call.1} parent=11 // pred_check
          %p125 = pneg %p37
        $region14: #{tpu_custom_call.1} parent=11 // pred_check_branch
          %127 = sbr.rel (%p125) target = $region16
        $region15: #{tpu_custom_call.1} parent=11 // pred_region
          _
        $region16: #{tpu_custom_call.1} parent=11 // pred_fallthru
          _
        // Predicated region
        $region17: #{tpu_custom_call.1} parent=11 // pred_check
          %p128 = pneg %p58
        $region18: #{tpu_custom_call.1} parent=11 // pred_check_branch
          %130 = sbr.rel (%p128) target = $region20
        $region19: #{tpu_custom_call.1} parent=11 // pred_region
          %s132 = ssub.s32 256, 256
          %133 = vsyncadd [#allocation3], %s132
          %s134 = sshll.u32 [#allocation2], 4
          %s135 = int_to_ptr.vmem [resolvable:$true] %s134
          %140 = dma.hbm_to_vmem [thread:$0]  %s1, 256, %s135, [#allocation3], 128, 128, 8
        $region20: #{tpu_custom_call.1} parent=11 // pred_fallthru
          _
      $region12: #{tpu_custom_call.1} parent=5 // pred_fallthru
        _
      %p141 = scmp.lt.s32.totalorder %s16, 4
      // Predicated region
      $region21: #{tpu_custom_call.1} parent=5 // pred_check
        %p142 = pneg %p141
      $region22: #{tpu_custom_call.1} parent=5 // pred_check_branch
        %144 = sbr.rel (%p142) target = $region24
      $region23: #{tpu_custom_call.1} parent=5 // pred_region
        // Predicated region
        $region25: #{tpu_custom_call.1} parent=23 // pred_check
          %p145 = pneg %p78
        $region26: #{tpu_custom_call.1} parent=23 // pred_check_branch
          %147 = sbr.rel (%p145) target = $region28
        $region27: #{tpu_custom_call.1} parent=23 // pred_region
          %s148 = sand.u32 %s68, 1
          %s149 = scalar_lea.sflag [#allocation6], %s148
          %s150 = sand.u32 %s68, 1
          %s151 = smul.addr %s150, 32
          %s152 = scalar_lea.vmem [#allocation5], %s151
          %s153 = smul.u32 2, %s16
          %s155 = ssub.s32 512, 512
          %156 = vsyncadd %s149, %s155
          %s157 = smul.addr %s153, 2
          %s158 = smul.addr %s157, 128
          %s159 = scalar_lea.hbm %s2, %s158
          %s160 = sshll.u32 %s152, 4
          %s161 = int_to_ptr.vmem [resolvable:$true] %s160
          %166 = dma.hbm_to_vmem [thread:$0]  %s159, 512, %s161, %s149, 128, 128, 8
        $region28: #{tpu_custom_call.1} parent=23 // pred_fallthru
          _
      $region24: #{tpu_custom_call.1} parent=5 // pred_fallthru
        _
      %p167 = scmp.le.s32.totalorder 1, %s16
      %p168 = scmp.lt.s32.totalorder %s16, 5
      %p169 = pnand %p167, %p168
      %p170 = pneg %p169
      // Predicated region
      $region29: #{tpu_custom_call.1} parent=5 // pred_check
        _
      $region30: #{tpu_custom_call.1} parent=5 // pred_check_branch
        %172 = sbr.rel (%p169) target = $region32
      $region31: #{tpu_custom_call.1} parent=5 // pred_region
        %s173 = ssub.s32 %s16, 1
        // Predicated region
        $region33: #{tpu_custom_call.1} parent=31 // pred_check
          %p174 = pneg %p58
        $region34: #{tpu_custom_call.1} parent=31 // pred_check_branch
          %176 = sbr.rel (%p174) target = $region36
        $region35: #{tpu_custom_call.1} parent=31 // pred_region
          %177 = dma.done [#allocation3], 256
        $region36: #{tpu_custom_call.1} parent=31 // pred_fallthru
          _
        %s178 = sand.u32 %s71, 1
        %s179 = scalar_lea.sflag [#allocation6], %s178
        %s180 = sand.u32 %s71, 1
        %s181 = smul.addr %s180, 32
        %s182 = scalar_lea.vmem [#allocation5], %s181
        // Predicated region
        $region37: #{tpu_custom_call.1} parent=31 // pred_check
          %p183 = pneg %p84
        $region38: #{tpu_custom_call.1} parent=31 // pred_check_branch
          %185 = sbr.rel (%p183) target = $region40
        $region39: #{tpu_custom_call.1} parent=31 // pred_region
          %186 = dma.done %s179, 512
        $region40: #{tpu_custom_call.1} parent=31 // pred_fallthru
          _
        %p187 = pneg %p37
        %p188 = pneg %p34
        %p189 = pneg %p58
        %p190 = pneg %p55
        %s191 = sand.u32 %s71, 1
        %s192 = scalar_lea.sflag [#allocation6], %s191
        %s193 = sand.u32 %s71, 1
        %s194 = smul.addr %s193, 32
        %s195 = scalar_lea.vmem [#allocation5], %s194
        %p196 = pneg %p84
        %p197 = pneg %p81
        %p198 = pneg %p110
        %p199 = pneg %p107
        %s200 = sand.u32 %s97, 1
        %s201 = scalar_lea.sflag [#allocation4], %s200
        %s202 = sand.u32 %s97, 1
        %s203 = smul.addr %s202, 896
        %s204 = scalar_lea.vmem [#allocation7], %s203
        %s205 = smul.u32 2, %s21
        %s206 = smul.u32 2, %s21
        %v208 = vld [vmem:[%s0] sm:$0xf]
        %v209 = vld [vmem:[%s0 + $0x4] sm:$0xf]
        %v210 = vld [vmem:[%s0 + $0x8] sm:$0xf]
        %v211 = vld [vmem:[%s0 + $0xc] sm:$0xf]
        %v212 = vld [vmem:[%s0 + $0x10] sm:$0xf]
        %v213 = vld [vmem:[%s0 + $0x14] sm:$0xf]
        %v214 = vld [vmem:[%s0 + $0x18] sm:$0xf]
        %v215 = vld [vmem:[%s0 + $0x1c] sm:$0xf]
        %v216 = vld [vmem:[%s0 + $0x20] sm:$0xf]
        %v217 = vld [vmem:[%s0 + $0x24] sm:$0xf]
        %v218 = vld [vmem:[%s0 + $0x28] sm:$0xf]
        %v219 = vld [vmem:[%s0 + $0x2c] sm:$0xf]
        %v220 = vld [vmem:[%s0 + $0x30] sm:$0xf]
        %v221 = vld [vmem:[%s0 + $0x34] sm:$0xf]
        %v222 = vld [vmem:[%s0 + $0x38] sm:$0xf]
        %v223 = vld [vmem:[%s0 + $0x3c] sm:$0xf]
        %v224 = vld [vmem:[%s0 + $0x40] sm:$0xf]
        %v225 = vld [vmem:[%s0 + $0x44] sm:$0xf]
        %v226 = vld [vmem:[%s0 + $0x48] sm:$0xf]
        %v227 = vld [vmem:[%s0 + $0x4c] sm:$0xf]
        %v228 = vld [vmem:[%s0 + $0x50] sm:$0xf]
        %v229 = vld [vmem:[%s0 + $0x54] sm:$0xf]
        %v230 = vld [vmem:[%s0 + $0x58] sm:$0xf]
        %v231 = vld [vmem:[%s0 + $0x5c] sm:$0xf]
        %v232 = vld [vmem:[%s0 + $0x60] sm:$0xf]
        %v233 = vld [vmem:[%s0 + $0x64] sm:$0xf]
        %v234 = vld [vmem:[%s0 + $0x68] sm:$0xf]
        %v235 = vld [vmem:[%s0 + $0x6c] sm:$0xf]
        %v236 = vld [vmem:[#allocation2] sm:$0xff]
        %v237 = vld [vmem:[#allocation2 + $0x8] sm:$0xff]
        %v238 = vld [vmem:[%s182] sm:$0xff]
        %v239 = vld [vmem:[%s182 + $0x8] sm:$0xff]
        %v240 = vld [vmem:[%s182 + $0x10] sm:$0xff]
        %v241 = vld [vmem:[%s182 + $0x18] sm:$0xff]
        %v242 = vpack.c.bf16 %v239, %v238
        %v243 = vpack.c.bf16 %v241, %v240
        %v246 = vunpack.c.l.b16 %v236
        %v247 = vunpack.c.h.b16 %v236
        %v248 = vunpack.c.l.b16 %v237
        %v249 = vunpack.c.h.b16 %v237
        %v250 = vpack.c.b16 %v248, %v246
        %v251 = vpack.c.b16 %v249, %v247
        %vm254 = vcmask 130048
        %v256 = vsel %vm254, %v242, 0
        %v259 = vsel %vm254, %v243, 0
        %261 = vmatprep.subr.bf16.mxu0 0
        %262 = vmatpush1.bf16.msra.mxu0 0
        %263 = vmatprep.subr.bf16.mxu0 0
        %264 = vmatpush1.bf16.msra.mxu0 0
        %265 = vmatprep.subr.bf16.mxu0 0
        %266 = vmatpush1.bf16.msra.mxu0 0
        %267 = vmatprep.subr.bf16.mxu0 0
        %268 = vmatpush1.bf16.msra.mxu0 0
        %269 = vmatprep.subr.bf16.mxu0 0
        %270 = vmatpush1.bf16.msra.mxu0 0
        %271 = vmatprep.subr.bf16.mxu0 0
        %272 = vmatpush1.bf16.msra.mxu0 0
        %273 = vmatprep.subr.bf16.mxu0 0
        %274 = vmatpush1.bf16.msra.mxu0 0
        %275 = vmatprep.subr.bf16.mxu0 %v251
        %276 = vmatpush1.bf16.msra.mxu0 %v250
        %277 = vmatprep.subr.bf16.mxu0 0
        %278 = vmatpush2.bf16.msra.mxu0 0
        %279 = vmatprep.subr.bf16.mxu0 0
        %280 = vmatpush2.bf16.msra.mxu0 0
        %281 = vmatprep.subr.bf16.mxu0 0
        %282 = vmatpush2.bf16.msra.mxu0 0
        %283 = vmatprep.subr.bf16.mxu0 0
        %284 = vmatpush2.bf16.msra.mxu0 0
        %285 = vmatprep.subr.bf16.mxu0 0
        %286 = vmatpush2.bf16.msra.mxu0 0
        %287 = vmatprep.subr.bf16.mxu0 0
        %288 = vmatpush2.bf16.msra.mxu0 0
        %289 = vmatprep.subr.bf16.mxu0 0
        %290 = vmatpush2.bf16.msra.mxu0 0
        %291 = vmatprep.subr.bf16.mxu0 0
        %292 = vmatpush2.bf16.msra.mxu0 0
        %293 = vmatprep.mubr.bf16.mxu0 0
        %294 = vmatmul.mubr.bf16.gmra.mxu0 %v256
        %v295 = vpop.f32.mrf.mxu0
        %v296 = vadd.f32 0.0, %v295
        %v297 = vpop.f32.mrf.mxu0
        %v298 = vadd.f32 0.0, %v297
        %v299 = vpop.f32.mrf.mxu0
        %v300 = vadd.f32 0.0, %v299
        %v301 = vpop.f32.mrf.mxu0
        %v302 = vadd.f32 0.0, %v301
        %303 = vmatprep.mubr.bf16.mxu0 0
        %304 = vmatmul.mubr.bf16.gmra.mxu0 %v259
        %v305 = vpop.f32.mrf.mxu0
        %v306 = vadd.f32 0.0, %v305
        %v307 = vpop.f32.mrf.mxu0
        %v308 = vadd.f32 0.0, %v307
        %v309 = vpop.f32.mrf.mxu0
        %v310 = vadd.f32 0.0, %v309
        %v311 = vpop.f32.mrf.mxu0
        %v312 = vadd.f32 0.0, %v311
        %313 = vdwg.mxu0
        %v314 = vpack.c.bf16 %v300, %v296
        %v315 = vpack.c.bf16 %v302, %v298
        %v316 = vpack.c.bf16 %v310, %v306
        %v317 = vpack.c.bf16 %v312, %v308
        %v346 = vunpack.c.l.b16 %v208
        %v347 = vunpack.c.l.b16 %v209
        %v348 = vunpack.c.l.b16 %v210
        %v349 = vunpack.c.l.b16 %v211
        %v350 = vunpack.c.l.b16 %v212
        %v351 = vunpack.c.l.b16 %v213
        %v352 = vunpack.c.l.b16 %v214
        %v353 = vunpack.c.l.b16 %v215
        %v354 = vunpack.c.l.b16 %v216
        %v355 = vunpack.c.l.b16 %v217
        %v356 = vunpack.c.l.b16 %v218
        %v357 = vunpack.c.l.b16 %v219
        %v358 = vunpack.c.l.b16 %v220
        %v359 = vunpack.c.l.b16 %v221
        %v360 = vunpack.c.l.b16 %v222
        %v361 = vunpack.c.l.b16 %v223
        %v362 = vunpack.c.l.b16 %v224
        %v363 = vunpack.c.l.b16 %v225
        %v364 = vunpack.c.l.b16 %v226
        %v365 = vunpack.c.l.b16 %v227
        %v366 = vunpack.c.l.b16 %v228
        %v367 = vunpack.c.l.b16 %v229
        %v368 = vunpack.c.l.b16 %v230
        %v369 = vunpack.c.l.b16 %v231
        %v370 = vunpack.c.l.b16 %v232
        %v371 = vunpack.c.l.b16 %v233
        %v372 = vunpack.c.l.b16 %v234
        %v373 = vunpack.c.l.b16 %v235
        %v374 = vpack.c.b16 %v347, %v346
        %v375 = vpack.c.b16 %v349, %v348
        %v376 = vpack.c.b16 %v351, %v350
        %v377 = vpack.c.b16 %v353, %v352
        %v378 = vpack.c.b16 %v355, %v354
        %v379 = vpack.c.b16 %v357, %v356
        %v380 = vpack.c.b16 %v359, %v358
        %v381 = vpack.c.b16 %v361, %v360
        %v382 = vpack.c.b16 %v363, %v362
        %v383 = vpack.c.b16 %v365, %v364
        %v384 = vpack.c.b16 %v367, %v366
        %v385 = vpack.c.b16 %v369, %v368
        %v386 = vpack.c.b16 %v371, %v370
        %v387 = vpack.c.b16 %v373, %v372
        %v389 = vsel %vm254, %v374, 0
        %v392 = vsel %vm254, %v375, 0
        %v395 = vsel %vm254, %v376, 0
        %v398 = vsel %vm254, %v377, 0
        %v401 = vsel %vm254, %v378, 0
        %v404 = vsel %vm254, %v379, 0
        %v407 = vsel %vm254, %v380, 0
        %v410 = vsel %vm254, %v381, 0
        %v413 = vsel %vm254, %v382, 0
        %v416 = vsel %vm254, %v383, 0
        %v419 = vsel %vm254, %v384, 0
        %v422 = vsel %vm254, %v385, 0
        %v425 = vsel %vm254, %v386, 0
        %v428 = vsel %vm254, %v387, 0
        %430 = vmatprep.subr.bf16.mxu0 0
        %431 = vmatpush1.bf16.msra.mxu0 0
        %432 = vmatprep.subr.bf16.mxu0 0
        %433 = vmatpush1.bf16.msra.mxu0 0
        %434 = vmatprep.subr.bf16.mxu0 0
        %435 = vmatpush1.bf16.msra.mxu0 0
        %436 = vmatprep.subr.bf16.mxu0 0
        %437 = vmatpush1.bf16.msra.mxu0 0
        %438 = vmatprep.subr.bf16.mxu0 0
        %439 = vmatpush1.bf16.msra.mxu0 0
        %440 = vmatprep.subr.bf16.mxu0 0
        %441 = vmatpush1.bf16.msra.mxu0 0
        %442 = vmatprep.subr.bf16.mxu0 0
        %443 = vmatpush1.bf16.msra.mxu0 0
        %444 = vmatprep.subr.bf16.mxu0 %v315
        %445 = vmatpush1.bf16.msra.mxu0 %v314
        %446 = vmatprep.subr.bf16.mxu0 0
        %447 = vmatpush2.bf16.msra.mxu0 0
        %448 = vmatprep.subr.bf16.mxu0 0
        %449 = vmatpush2.bf16.msra.mxu0 0
        %450 = vmatprep.subr.bf16.mxu0 0
        %451 = vmatpush2.bf16.msra.mxu0 0
        %452 = vmatprep.subr.bf16.mxu0 0
        %453 = vmatpush2.bf16.msra.mxu0 0
        %454 = vmatprep.subr.bf16.mxu0 0
        %455 = vmatpush2.bf16.msra.mxu0 0
        %456 = vmatprep.subr.bf16.mxu0 0
        %457 = vmatpush2.bf16.msra.mxu0 0
        %458 = vmatprep.subr.bf16.mxu0 0
        %459 = vmatpush2.bf16.msra.mxu0 0
        %460 = vmatprep.subr.bf16.mxu0 0
        %461 = vmatpush2.bf16.msra.mxu0 0
        %462 = vmatprep.mubr.bf16.mxu0 0
        %463 = vmatmul.mubr.bf16.gmra.mxu0 %v389
        %v464 = vpop.f32.mrf.mxu0
        %v465 = vadd.f32 0.0, %v464
        %v466 = vpop.f32.mrf.mxu0
        %v467 = vadd.f32 0.0, %v466
        %v468 = vpop.f32.mrf.mxu0
        %v469 = vadd.f32 0.0, %v468
        %v470 = vpop.f32.mrf.mxu0
        %v471 = vadd.f32 0.0, %v470
        %472 = vmatprep.mubr.bf16.mxu0 0
        %473 = vmatmul.mubr.bf16.gmra.mxu0 %v392
        %v474 = vpop.f32.mrf.mxu0
        %v475 = vadd.f32 0.0, %v474
        %v476 = vpop.f32.mrf.mxu0
        %v477 = vadd.f32 0.0, %v476
        %v478 = vpop.f32.mrf.mxu0
        %v479 = vadd.f32 0.0, %v478
        %v480 = vpop.f32.mrf.mxu0
        %v481 = vadd.f32 0.0, %v480
        %482 = vmatprep.mubr.bf16.mxu0 0
        %483 = vmatmul.mubr.bf16.gmra.mxu0 %v395
        %v484 = vpop.f32.mrf.mxu0
        %v485 = vadd.f32 0.0, %v484
        %v486 = vpop.f32.mrf.mxu0
        %v487 = vadd.f32 0.0, %v486
        %v488 = vpop.f32.mrf.mxu0
        %v489 = vadd.f32 0.0, %v488
        %v490 = vpop.f32.mrf.mxu0
        %v491 = vadd.f32 0.0, %v490
        %492 = vmatprep.mubr.bf16.mxu0 0
        %493 = vmatmul.mubr.bf16.gmra.mxu0 %v398
        %v494 = vpop.f32.mrf.mxu0
        %v495 = vadd.f32 0.0, %v494
        %v496 = vpop.f32.mrf.mxu0
        %v497 = vadd.f32 0.0, %v496
        %v498 = vpop.f32.mrf.mxu0
        %v499 = vadd.f32 0.0, %v498
        %v500 = vpop.f32.mrf.mxu0
        %v501 = vadd.f32 0.0, %v500
        %502 = vmatprep.mubr.bf16.mxu0 0
        %503 = vmatmul.mubr.bf16.gmra.mxu0 %v401
        %v504 = vpop.f32.mrf.mxu0
        %v505 = vadd.f32 0.0, %v504
        %v506 = vpop.f32.mrf.mxu0
        %v507 = vadd.f32 0.0, %v506
        %v508 = vpop.f32.mrf.mxu0
        %v509 = vadd.f32 0.0, %v508
        %v510 = vpop.f32.mrf.mxu0
        %v511 = vadd.f32 0.0, %v510
        %512 = vmatprep.mubr.bf16.mxu0 0
        %513 = vmatmul.mubr.bf16.gmra.mxu0 %v404
        %v514 = vpop.f32.mrf.mxu0
        %v515 = vadd.f32 0.0, %v514
        %v516 = vpop.f32.mrf.mxu0
        %v517 = vadd.f32 0.0, %v516
        %v518 = vpop.f32.mrf.mxu0
        %v519 = vadd.f32 0.0, %v518
        %v520 = vpop.f32.mrf.mxu0
        %v521 = vadd.f32 0.0, %v520
        %522 = vmatprep.mubr.bf16.mxu0 0
        %523 = vmatmul.mubr.bf16.gmra.mxu0 %v407
        %v524 = vpop.f32.mrf.mxu0
        %v525 = vadd.f32 0.0, %v524
        %v526 = vpop.f32.mrf.mxu0
        %v527 = vadd.f32 0.0, %v526
        %v528 = vpop.f32.mrf.mxu0
        %v529 = vadd.f32 0.0, %v528
        %v530 = vpop.f32.mrf.mxu0
        %v531 = vadd.f32 0.0, %v530
        %532 = vmatprep.mubr.bf16.mxu0 0
        %533 = vmatmul.mubr.bf16.gmra.mxu0 %v410
        %v534 = vpop.f32.mrf.mxu0
        %v535 = vadd.f32 0.0, %v534
        %v536 = vpop.f32.mrf.mxu0
        %v537 = vadd.f32 0.0, %v536
        %v538 = vpop.f32.mrf.mxu0
        %v539 = vadd.f32 0.0, %v538
        %v540 = vpop.f32.mrf.mxu0
        %v541 = vadd.f32 0.0, %v540
        %542 = vmatprep.mubr.bf16.mxu0 0
        %543 = vmatmul.mubr.bf16.gmra.mxu0 %v413
        %v544 = vpop.f32.mrf.mxu0
        %v545 = vadd.f32 0.0, %v544
        %v546 = vpop.f32.mrf.mxu0
        %v547 = vadd.f32 0.0, %v546
        %v548 = vpop.f32.mrf.mxu0
        %v549 = vadd.f32 0.0, %v548
        %v550 = vpop.f32.mrf.mxu0
        %v551 = vadd.f32 0.0, %v550
        %552 = vmatprep.mubr.bf16.mxu0 0
        %553 = vmatmul.mubr.bf16.gmra.mxu0 %v416
        %v554 = vpop.f32.mrf.mxu0
        %v555 = vadd.f32 0.0, %v554
        %v556 = vpop.f32.mrf.mxu0
        %v557 = vadd.f32 0.0, %v556
        %v558 = vpop.f32.mrf.mxu0
        %v559 = vadd.f32 0.0, %v558
        %v560 = vpop.f32.mrf.mxu0
        %v561 = vadd.f32 0.0, %v560
        %562 = vmatprep.mubr.bf16.mxu0 0
        %563 = vmatmul.mubr.bf16.gmra.mxu0 %v419
        %v564 = vpop.f32.mrf.mxu0
        %v565 = vadd.f32 0.0, %v564
        %v566 = vpop.f32.mrf.mxu0
        %v567 = vadd.f32 0.0, %v566
        %v568 = vpop.f32.mrf.mxu0
        %v569 = vadd.f32 0.0, %v568
        %v570 = vpop.f32.mrf.mxu0
        %v571 = vadd.f32 0.0, %v570
        %572 = vmatprep.mubr.bf16.mxu0 0
        %573 = vmatmul.mubr.bf16.gmra.mxu0 %v422
        %v574 = vpop.f32.mrf.mxu0
        %v575 = vadd.f32 0.0, %v574
        %v576 = vpop.f32.mrf.mxu0
        %v577 = vadd.f32 0.0, %v576
        %v578 = vpop.f32.mrf.mxu0
        %v579 = vadd.f32 0.0, %v578
        %v580 = vpop.f32.mrf.mxu0
        %v581 = vadd.f32 0.0, %v580
        %582 = vmatprep.mubr.bf16.mxu0 0
        %583 = vmatmul.mubr.bf16.gmra.mxu0 %v425
        %v584 = vpop.f32.mrf.mxu0
        %v585 = vadd.f32 0.0, %v584
        %v586 = vpop.f32.mrf.mxu0
        %v587 = vadd.f32 0.0, %v586
        %v588 = vpop.f32.mrf.mxu0
        %v589 = vadd.f32 0.0, %v588
        %v590 = vpop.f32.mrf.mxu0
        %v591 = vadd.f32 0.0, %v590
        %592 = vmatprep.mubr.bf16.mxu0 0
        %593 = vmatmul.mubr.bf16.gmra.mxu0 %v428
        %v594 = vpop.f32.mrf.mxu0
        %v595 = vadd.f32 0.0, %v594
        %v596 = vpop.f32.mrf.mxu0
        %v597 = vadd.f32 0.0, %v596
        %v598 = vpop.f32.mrf.mxu0
        %v599 = vadd.f32 0.0, %v598
        %v600 = vpop.f32.mrf.mxu0
        %v601 = vadd.f32 0.0, %v600
        %602 = vdwg.mxu0
        %603 = vst [vmem:[%s204] sm:$0xff] %v465
        %vm604 = vcmask 785408
        %605 = vst.msk [vmem:[%s204 + $0x8] sm:$0xff] %vm604, %v467
        %606 = vst [vmem:[%s204 + $0x10] sm:$0xff] %v469
        %607 = vst.msk [vmem:[%s204 + $0x18] sm:$0xff] %vm604, %v471
        %608 = vst [vmem:[%s204 + $0x20] sm:$0xff] %v475
        %609 = vst.msk [vmem:[%s204 + $0x28] sm:$0xff] %vm604, %v477
        %610 = vst [vmem:[%s204 + $0x30] sm:$0xff] %v479
        %611 = vst.msk [vmem:[%s204 + $0x38] sm:$0xff] %vm604, %v481
        %612 = vst [vmem:[%s204 + $0x40] sm:$0xff] %v485
        %613 = vst.msk [vmem:[%s204 + $0x48] sm:$0xff] %vm604, %v487
        %614 = vst [vmem:[%s204 + $0x50] sm:$0xff] %v489
        %615 = vst.msk [vmem:[%s204 + $0x58] sm:$0xff] %vm604, %v491
        %616 = vst [vmem:[%s204 + $0x60] sm:$0xff] %v495
        %617 = vst.msk [vmem:[%s204 + $0x68] sm:$0xff] %vm604, %v497
        %618 = vst [vmem:[%s204 + $0x70] sm:$0xff] %v499
        %619 = vst.msk [vmem:[%s204 + $0x78] sm:$0xff] %vm604, %v501
        %620 = vst [vmem:[%s204 + $0x80] sm:$0xff] %v505
        %621 = vst.msk [vmem:[%s204 + $0x88] sm:$0xff] %vm604, %v507
        %622 = vst [vmem:[%s204 + $0x90] sm:$0xff] %v509
        %623 = vst.msk [vmem:[%s204 + $0x98] sm:$0xff] %vm604, %v511
        %624 = vst [vmem:[%s204 + $0xa0] sm:$0xff] %v515
        %625 = vst.msk [vmem:[%s204 + $0xa8] sm:$0xff] %vm604, %v517
        %626 = vst [vmem:[%s204 + $0xb0] sm:$0xff] %v519
        %627 = vst.msk [vmem:[%s204 + $0xb8] sm:$0xff] %vm604, %v521
        %628 = vst [vmem:[%s204 + $0xc0] sm:$0xff] %v525
        %629 = vst.msk [vmem:[%s204 + $0xc8] sm:$0xff] %vm604, %v527
        %630 = vst [vmem:[%s204 + $0xd0] sm:$0xff] %v529
        %631 = vst.msk [vmem:[%s204 + $0xd8] sm:$0xff] %vm604, %v531
        %632 = vst [vmem:[%s204 + $0xe0] sm:$0xff] %v535
        %633 = vst.msk [vmem:[%s204 + $0xe8] sm:$0xff] %vm604, %v537
        %634 = vst [vmem:[%s204 + $0xf0] sm:$0xff] %v539
        %635 = vst.msk [vmem:[%s204 + $0xf8] sm:$0xff] %vm604, %v541
        %636 = vst [vmem:[%s204 + $0x100] sm:$0xff] %v545
        %637 = vst.msk [vmem:[%s204 + $0x108] sm:$0xff] %vm604, %v547
        %638 = vst [vmem:[%s204 + $0x110] sm:$0xff] %v549
        %639 = vst.msk [vmem:[%s204 + $0x118] sm:$0xff] %vm604, %v551
        %640 = vst [vmem:[%s204 + $0x120] sm:$0xff] %v555
        %641 = vst.msk [vmem:[%s204 + $0x128] sm:$0xff] %vm604, %v557
        %642 = vst [vmem:[%s204 + $0x130] sm:$0xff] %v559
        %643 = vst.msk [vmem:[%s204 + $0x138] sm:$0xff] %vm604, %v561
        %644 = vst [vmem:[%s204 + $0x140] sm:$0xff] %v565
        %645 = vst.msk [vmem:[%s204 + $0x148] sm:$0xff] %vm604, %v567
        %646 = vst [vmem:[%s204 + $0x150] sm:$0xff] %v569
        %647 = vst.msk [vmem:[%s204 + $0x158] sm:$0xff] %vm604, %v571
        %648 = vst [vmem:[%s204 + $0x160] sm:$0xff] %v575
        %649 = vst.msk [vmem:[%s204 + $0x168] sm:$0xff] %vm604, %v577
        %650 = vst [vmem:[%s204 + $0x170] sm:$0xff] %v579
        %651 = vst.msk [vmem:[%s204 + $0x178] sm:$0xff] %vm604, %v581
        %652 = vst [vmem:[%s204 + $0x180] sm:$0xff] %v585
        %653 = vst.msk [vmem:[%s204 + $0x188] sm:$0xff] %vm604, %v587
        %654 = vst [vmem:[%s204 + $0x190] sm:$0xff] %v589
        %655 = vst.msk [vmem:[%s204 + $0x198] sm:$0xff] %vm604, %v591
        %656 = vst [vmem:[%s204 + $0x1a0] sm:$0xff] %v595
        %657 = vst.msk [vmem:[%s204 + $0x1a8] sm:$0xff] %vm604, %v597
        %658 = vst [vmem:[%s204 + $0x1b0] sm:$0xff] %v599
        %659 = vst.msk [vmem:[%s204 + $0x1b8] sm:$0xff] %vm604, %v601
        %660 = vmatprep.subr.bf16.mxu0 0
        %661 = vmatpush1.bf16.msra.mxu0 0
        %662 = vmatprep.subr.bf16.mxu0 0
        %663 = vmatpush1.bf16.msra.mxu0 0
        %664 = vmatprep.subr.bf16.mxu0 0
        %665 = vmatpush1.bf16.msra.mxu0 0
        %666 = vmatprep.subr.bf16.mxu0 0
        %667 = vmatpush1.bf16.msra.mxu0 0
        %668 = vmatprep.subr.bf16.mxu0 0
        %669 = vmatpush1.bf16.msra.mxu0 0
        %670 = vmatprep.subr.bf16.mxu0 0
        %671 = vmatpush1.bf16.msra.mxu0 0
        %672 = vmatprep.subr.bf16.mxu0 0
        %673 = vmatpush1.bf16.msra.mxu0 0
        %674 = vmatprep.subr.bf16.mxu0 %v317
        %675 = vmatpush1.bf16.msra.mxu0 %v316
        %676 = vmatprep.subr.bf16.mxu0 0
        %677 = vmatpush2.bf16.msra.mxu0 0
        %678 = vmatprep.subr.bf16.mxu0 0
        %679 = vmatpush2.bf16.msra.mxu0 0
        %680 = vmatprep.subr.bf16.mxu0 0
        %681 = vmatpush2.bf16.msra.mxu0 0
        %682 = vmatprep.subr.bf16.mxu0 0
        %683 = vmatpush2.bf16.msra.mxu0 0
        %684 = vmatprep.subr.bf16.mxu0 0
        %685 = vmatpush2.bf16.msra.mxu0 0
        %686 = vmatprep.subr.bf16.mxu0 0
        %687 = vmatpush2.bf16.msra.mxu0 0
        %688 = vmatprep.subr.bf16.mxu0 0
        %689 = vmatpush2.bf16.msra.mxu0 0
        %690 = vmatprep.subr.bf16.mxu0 0
        %691 = vmatpush2.bf16.msra.mxu0 0
        %692 = vmatprep.mubr.bf16.mxu0 0
        %693 = vmatmul.mubr.bf16.gmra.mxu0 %v389
        %v694 = vpop.f32.mrf.mxu0
        %v695 = vadd.f32 0.0, %v694
        %v696 = vpop.f32.mrf.mxu0
        %v697 = vadd.f32 0.0, %v696
        %v698 = vpop.f32.mrf.mxu0
        %v699 = vadd.f32 0.0, %v698
        %v700 = vpop.f32.mrf.mxu0
        %v701 = vadd.f32 0.0, %v700
        %702 = vmatprep.mubr.bf16.mxu0 0
        %703 = vmatmul.mubr.bf16.gmra.mxu0 %v392
        %v704 = vpop.f32.mrf.mxu0
        %v705 = vadd.f32 0.0, %v704
        %v706 = vpop.f32.mrf.mxu0
        %v707 = vadd.f32 0.0, %v706
        %v708 = vpop.f32.mrf.mxu0
        %v709 = vadd.f32 0.0, %v708
        %v710 = vpop.f32.mrf.mxu0
        %v711 = vadd.f32 0.0, %v710
        %712 = vmatprep.mubr.bf16.mxu0 0
        %713 = vmatmul.mubr.bf16.gmra.mxu0 %v395
        %v714 = vpop.f32.mrf.mxu0
        %v715 = vadd.f32 0.0, %v714
        %v716 = vpop.f32.mrf.mxu0
        %v717 = vadd.f32 0.0, %v716
        %v718 = vpop.f32.mrf.mxu0
        %v719 = vadd.f32 0.0, %v718
        %v720 = vpop.f32.mrf.mxu0
        %v721 = vadd.f32 0.0, %v720
        %722 = vmatprep.mubr.bf16.mxu0 0
        %723 = vmatmul.mubr.bf16.gmra.mxu0 %v398
        %v724 = vpop.f32.mrf.mxu0
        %v725 = vadd.f32 0.0, %v724
        %v726 = vpop.f32.mrf.mxu0
        %v727 = vadd.f32 0.0, %v726
        %v728 = vpop.f32.mrf.mxu0
        %v729 = vadd.f32 0.0, %v728
        %v730 = vpop.f32.mrf.mxu0
        %v731 = vadd.f32 0.0, %v730
        %732 = vmatprep.mubr.bf16.mxu0 0
        %733 = vmatmul.mubr.bf16.gmra.mxu0 %v401
        %v734 = vpop.f32.mrf.mxu0
        %v735 = vadd.f32 0.0, %v734
        %v736 = vpop.f32.mrf.mxu0
        %v737 = vadd.f32 0.0, %v736
        %v738 = vpop.f32.mrf.mxu0
        %v739 = vadd.f32 0.0, %v738
        %v740 = vpop.f32.mrf.mxu0
        %v741 = vadd.f32 0.0, %v740
        %742 = vmatprep.mubr.bf16.mxu0 0
        %743 = vmatmul.mubr.bf16.gmra.mxu0 %v404
        %v744 = vpop.f32.mrf.mxu0
        %v745 = vadd.f32 0.0, %v744
        %v746 = vpop.f32.mrf.mxu0
        %v747 = vadd.f32 0.0, %v746
        %v748 = vpop.f32.mrf.mxu0
        %v749 = vadd.f32 0.0, %v748
        %v750 = vpop.f32.mrf.mxu0
        %v751 = vadd.f32 0.0, %v750
        %752 = vmatprep.mubr.bf16.mxu0 0
        %753 = vmatmul.mubr.bf16.gmra.mxu0 %v407
        %v754 = vpop.f32.mrf.mxu0
        %v755 = vadd.f32 0.0, %v754
        %v756 = vpop.f32.mrf.mxu0
        %v757 = vadd.f32 0.0, %v756
        %v758 = vpop.f32.mrf.mxu0
        %v759 = vadd.f32 0.0, %v758
        %v760 = vpop.f32.mrf.mxu0
        %v761 = vadd.f32 0.0, %v760
        %762 = vmatprep.mubr.bf16.mxu0 0
        %763 = vmatmul.mubr.bf16.gmra.mxu0 %v410
        %v764 = vpop.f32.mrf.mxu0
        %v765 = vadd.f32 0.0, %v764
        %v766 = vpop.f32.mrf.mxu0
        %v767 = vadd.f32 0.0, %v766
        %v768 = vpop.f32.mrf.mxu0
        %v769 = vadd.f32 0.0, %v768
        %v770 = vpop.f32.mrf.mxu0
        %v771 = vadd.f32 0.0, %v770
        %772 = vmatprep.mubr.bf16.mxu0 0
        %773 = vmatmul.mubr.bf16.gmra.mxu0 %v413
        %v774 = vpop.f32.mrf.mxu0
        %v775 = vadd.f32 0.0, %v774
        %v776 = vpop.f32.mrf.mxu0
        %v777 = vadd.f32 0.0, %v776
        %v778 = vpop.f32.mrf.mxu0
        %v779 = vadd.f32 0.0, %v778
        %v780 = vpop.f32.mrf.mxu0
        %v781 = vadd.f32 0.0, %v780
        %782 = vmatprep.mubr.bf16.mxu0 0
        %783 = vmatmul.mubr.bf16.gmra.mxu0 %v416
        %v784 = vpop.f32.mrf.mxu0
        %v785 = vadd.f32 0.0, %v784
        %v786 = vpop.f32.mrf.mxu0
        %v787 = vadd.f32 0.0, %v786
        %v788 = vpop.f32.mrf.mxu0
        %v789 = vadd.f32 0.0, %v788
        %v790 = vpop.f32.mrf.mxu0
        %v791 = vadd.f32 0.0, %v790
        %792 = vmatprep.mubr.bf16.mxu0 0
        %793 = vmatmul.mubr.bf16.gmra.mxu0 %v419
        %v794 = vpop.f32.mrf.mxu0
        %v795 = vadd.f32 0.0, %v794
        %v796 = vpop.f32.mrf.mxu0
        %v797 = vadd.f32 0.0, %v796
        %v798 = vpop.f32.mrf.mxu0
        %v799 = vadd.f32 0.0, %v798
        %v800 = vpop.f32.mrf.mxu0
        %v801 = vadd.f32 0.0, %v800
        %802 = vmatprep.mubr.bf16.mxu0 0
        %803 = vmatmul.mubr.bf16.gmra.mxu0 %v422
        %v804 = vpop.f32.mrf.mxu0
        %v805 = vadd.f32 0.0, %v804
        %v806 = vpop.f32.mrf.mxu0
        %v807 = vadd.f32 0.0, %v806
        %v808 = vpop.f32.mrf.mxu0
        %v809 = vadd.f32 0.0, %v808
        %v810 = vpop.f32.mrf.mxu0
        %v811 = vadd.f32 0.0, %v810
        %812 = vmatprep.mubr.bf16.mxu0 0
        %813 = vmatmul.mubr.bf16.gmra.mxu0 %v425
        %v814 = vpop.f32.mrf.mxu0
        %v815 = vadd.f32 0.0, %v814
        %v816 = vpop.f32.mrf.mxu0
        %v817 = vadd.f32 0.0, %v816
        %v818 = vpop.f32.mrf.mxu0
        %v819 = vadd.f32 0.0, %v818
        %v820 = vpop.f32.mrf.mxu0
        %v821 = vadd.f32 0.0, %v820
        %822 = vmatprep.mubr.bf16.mxu0 0
        %823 = vmatmul.mubr.bf16.gmra.mxu0 %v428
        %v824 = vpop.f32.mrf.mxu0
        %v825 = vadd.f32 0.0, %v824
        %v826 = vpop.f32.mrf.mxu0
        %v827 = vadd.f32 0.0, %v826
        %v828 = vpop.f32.mrf.mxu0
        %v829 = vadd.f32 0.0, %v828
        %v830 = vpop.f32.mrf.mxu0
        %v831 = vadd.f32 0.0, %v830
        %832 = vdwg.mxu0
        %s833 = scalar_lea.vmem %s204, 448 [#allocation7]
        %834 = vst [vmem:[%s833] sm:$0xff] %v695
        %835 = vst.msk [vmem:[%s833 + $0x8] sm:$0xff] %vm604, %v697
        %836 = vst [vmem:[%s833 + $0x10] sm:$0xff] %v699
        %837 = vst.msk [vmem:[%s833 + $0x18] sm:$0xff] %vm604, %v701
        %838 = vst [vmem:[%s833 + $0x20] sm:$0xff] %v705
        %839 = vst.msk [vmem:[%s833 + $0x28] sm:$0xff] %vm604, %v707
        %840 = vst [vmem:[%s833 + $0x30] sm:$0xff] %v709
        %841 = vst.msk [vmem:[%s833 + $0x38] sm:$0xff] %vm604, %v711
        %842 = vst [vmem:[%s833 + $0x40] sm:$0xff] %v715
        %843 = vst.msk [vmem:[%s833 + $0x48] sm:$0xff] %vm604, %v717
        %844 = vst [vmem:[%s833 + $0x50] sm:$0xff] %v719
        %845 = vst.msk [vmem:[%s833 + $0x58] sm:$0xff] %vm604, %v721
        %846 = vst [vmem:[%s833 + $0x60] sm:$0xff] %v725
        %847 = vst.msk [vmem:[%s833 + $0x68] sm:$0xff] %vm604, %v727
        %848 = vst [vmem:[%s833 + $0x70] sm:$0xff] %v729
        %849 = vst.msk [vmem:[%s833 + $0x78] sm:$0xff] %vm604, %v731
        %850 = vst [vmem:[%s833 + $0x80] sm:$0xff] %v735
        %851 = vst.msk [vmem:[%s833 + $0x88] sm:$0xff] %vm604, %v737
        %852 = vst [vmem:[%s833 + $0x90] sm:$0xff] %v739
        %853 = vst.msk [vmem:[%s833 + $0x98] sm:$0xff] %vm604, %v741
        %854 = vst [vmem:[%s833 + $0xa0] sm:$0xff] %v745
        %855 = vst.msk [vmem:[%s833 + $0xa8] sm:$0xff] %vm604, %v747
        %856 = vst [vmem:[%s833 + $0xb0] sm:$0xff] %v749
        %857 = vst.msk [vmem:[%s833 + $0xb8] sm:$0xff] %vm604, %v751
        %858 = vst [vmem:[%s833 + $0xc0] sm:$0xff] %v755
        %859 = vst.msk [vmem:[%s833 + $0xc8] sm:$0xff] %vm604, %v757
        %860 = vst [vmem:[%s833 + $0xd0] sm:$0xff] %v759
        %861 = vst.msk [vmem:[%s833 + $0xd8] sm:$0xff] %vm604, %v761
        %862 = vst [vmem:[%s833 + $0xe0] sm:$0xff] %v765
        %863 = vst.msk [vmem:[%s833 + $0xe8] sm:$0xff] %vm604, %v767
        %864 = vst [vmem:[%s833 + $0xf0] sm:$0xff] %v769
        %865 = vst.msk [vmem:[%s833 + $0xf8] sm:$0xff] %vm604, %v771
        %866 = vst [vmem:[%s833 + $0x100] sm:$0xff] %v775
        %867 = vst.msk [vmem:[%s833 + $0x108] sm:$0xff] %vm604, %v777
        %868 = vst [vmem:[%s833 + $0x110] sm:$0xff] %v779
        %869 = vst.msk [vmem:[%s833 + $0x118] sm:$0xff] %vm604, %v781
        %870 = vst [vmem:[%s833 + $0x120] sm:$0xff] %v785
        %871 = vst.msk [vmem:[%s833 + $0x128] sm:$0xff] %vm604, %v787
        %872 = vst [vmem:[%s833 + $0x130] sm:$0xff] %v789
        %873 = vst.msk [vmem:[%s833 + $0x138] sm:$0xff] %vm604, %v791
        %874 = vst [vmem:[%s833 + $0x140] sm:$0xff] %v795
        %875 = vst.msk [vmem:[%s833 + $0x148] sm:$0xff] %vm604, %v797
        %876 = vst [vmem:[%s833 + $0x150] sm:$0xff] %v799
        %877 = vst.msk [vmem:[%s833 + $0x158] sm:$0xff] %vm604, %v801
        %878 = vst [vmem:[%s833 + $0x160] sm:$0xff] %v805
        %879 = vst.msk [vmem:[%s833 + $0x168] sm:$0xff] %vm604, %v807
        %880 = vst [vmem:[%s833 + $0x170] sm:$0xff] %v809
        %881 = vst.msk [vmem:[%s833 + $0x178] sm:$0xff] %vm604, %v811
        %882 = vst [vmem:[%s833 + $0x180] sm:$0xff] %v815
        %883 = vst.msk [vmem:[%s833 + $0x188] sm:$0xff] %vm604, %v817
        %884 = vst [vmem:[%s833 + $0x190] sm:$0xff] %v819
        %885 = vst.msk [vmem:[%s833 + $0x198] sm:$0xff] %vm604, %v821
        %886 = vst [vmem:[%s833 + $0x1a0] sm:$0xff] %v825
        %887 = vst.msk [vmem:[%s833 + $0x1a8] sm:$0xff] %vm604, %v827
        %888 = vst [vmem:[%s833 + $0x1b0] sm:$0xff] %v829
        %889 = vst.msk [vmem:[%s833 + $0x1b8] sm:$0xff] %vm604, %v831
        %s890 = sand.u32 %s97, 1
        %s891 = scalar_lea.sflag [#allocation4], %s890
        %s892 = sand.u32 %s97, 1
        %s893 = smul.addr %s892, 896
        %s894 = scalar_lea.vmem [#allocation7], %s893
        // Predicated region
        $region41: #{tpu_custom_call.1} parent=31 // pred_check
          %p895 = pneg %p107
        $region42: #{tpu_custom_call.1} parent=31 // pred_check_branch
          %897 = sbr.rel (%p895) target = $region44
        $region43: #{tpu_custom_call.1} parent=31 // pred_region
          %s898 = smul.u32 2, %s21
          %s900 = ssub.s32 14336, 14336
          %901 = vsyncadd %s891, %s900
          %s902 = smul.addr %s898, 56
          %s903 = smul.addr %s902, 128
          %s904 = scalar_lea.hbm %s3, %s903
          %s905 = sshll.u32 %s894, 4
          %s906 = int_to_ptr.vmem [resolvable:$true] %s905
          %911 = dma.vmem_to_hbm [thread:$0]  %s906, 14336, %s904, %s891, 256, 256, 16
        $region44: #{tpu_custom_call.1} parent=31 // pred_fallthru
          _
      $region32: #{tpu_custom_call.1} parent=5 // pred_fallthru
        _
      %p912 = scmp.le.s32.totalorder 2, %s16
      // Predicated region
      $region45: #{tpu_custom_call.1} parent=5 // pred_check
        %p913 = pneg %p912
      $region46: #{tpu_custom_call.1} parent=5 // pred_check_branch
        %915 = sbr.rel (%p913) target = $region48
      $region47: #{tpu_custom_call.1} parent=5 // pred_region
        %s916 = ssub.s32 %s16, 2
        // Predicated region
        $region49: #{tpu_custom_call.1} parent=47 // pred_check
          %p917 = pneg %p113
        $region50: #{tpu_custom_call.1} parent=47 // pred_check_branch
          %919 = sbr.rel (%p917) target = $region52
        $region51: #{tpu_custom_call.1} parent=47 // pred_region
          %s920 = sand.u32 %s98, 1
          %s921 = scalar_lea.sflag [#allocation4], %s920
          %s922 = sand.u32 %s98, 1
          %s923 = smul.addr %s922, 896
          %s924 = scalar_lea.vmem [#allocation7], %s923
          %925 = dma.done %s921, 14336
        $region52: #{tpu_custom_call.1} parent=47 // pred_fallthru
          _
      $region48: #{tpu_custom_call.1} parent=5 // pred_fallthru
        _
    $region6: #{tpu_custom_call.1} parent=1 // loop_footer
      %s20 = sadd.s32 1, %s16
    $region7: #{tpu_custom_call.1} parent=1 // loop_footer_branch
      %15 = sbr.rel target = $region3
    $region8: #{tpu_custom_call.1} parent=1 // loop_exit
      _
    %926 = vsyncpa [#allocation3], 1
    %s927 = scalar_lea.sflag [#allocation3], 1
    %928 = vsyncpa %s927, 1
    %929 = vsyncpa [#allocation6], 1
    %s930 = scalar_lea.sflag [#allocation6], 1
    %931 = vsyncpa %s930, 1
    %932 = vsyncpa [#allocation4], 1
    %s933 = scalar_lea.sflag [#allocation4], 1
    %934 = vsyncpa %s933, 1

</llo_original>
